<compile_context>
chip_gen: v7x
topology: tpu7x:2x2x1
jax: 0.10.0
libtpu: 0.0.40
codegen_flags: <defaults>
</compile_context>

<pallas_src>
import functools

import jax
import jax.numpy as jnp
from jax import lax
from jax.experimental import pallas as pl
from jax.experimental.pallas import tpu as pltpu

BN_EPS = 1e-5


def _decoder_kernel(seed_ref, z_lhs_ref, z_rhs_ref, gamma_ref, beta_ref, o_ref,
                    *, dropout_p, n_rows, n_cols_total, tile_n):
    # --- z @ z.T column slab on the MXU (bf16 inputs, f32 accumulation) -----
    lhs = z_lhs_ref[...].astype(jnp.bfloat16)            # (N, D)
    rhs = z_rhs_ref[...].astype(jnp.bfloat16)            # (TN, D)
    h = lax.dot_general(
        lhs, rhs,
        dimension_numbers=(((1,), (1,)), ((), ())),      # contract on D, no transpose
        preferred_element_type=jnp.float32)              # (N, TN) f32

    # --- activation (ReLU) ---------------------------------------------------
    h = jnp.maximum(h, 0.0)

    # --- BatchNorm1d (training mode): one-pass per-column stats over rows ---
    inv_n = 1.0 / n_rows
    s1 = jnp.sum(h, axis=0, keepdims=True)               # (1, TN)
    s2 = jnp.sum(h * h, axis=0, keepdims=True)           # (1, TN)
    mean = s1 * inv_n
    var = jnp.maximum(s2 * inv_n - mean * mean, 0.0)     # biased variance
    inv_std = lax.rsqrt(var + BN_EPS)

    # --- fold BN affine (+ dropout keep-scale) into per-column scale/shift --
    keep_scale = (1.0 / (1.0 - dropout_p)) if dropout_p > 0.0 else 1.0
    g = gamma_ref[...] * inv_std                          # (1, TN)
    scale = g * keep_scale
    shift = (beta_ref[...] - mean * g) * keep_scale
    out = h * scale + shift                               # 1 mul + 1 add per element

    # --- Dropout (inverted, training mode); tile-dependent hash RNG ----------
    if dropout_p > 0.0:
        col0 = pl.program_id(0) * tile_n
        rows = lax.broadcasted_iota(jnp.int32, h.shape, 0)
        cols = lax.broadcasted_iota(jnp.int32, h.shape, 1) + col0
        idx = (rows * n_cols_total + cols).astype(jnp.uint32)   # global element id
        s = seed_ref[0].astype(jnp.uint32)
        x = idx + s * jnp.uint32(0x9E3779B9)
        # splitmix32-style finalizer (VPU-only: xor / shift / wrapping mul)
        x = x ^ (x >> 16)
        x = x * jnp.uint32(0x7FEB352D)
        x = x ^ (x >> 15)
        x = x * jnp.uint32(0x846CA68B)
        x = x ^ (x >> 16)
        threshold = jnp.uint32(min(int(dropout_p * 4294967296.0), 4294967295))
        out = jnp.where(x >= threshold, out, 0.0)

    o_ref[...] = out.astype(o_ref.dtype)


def _pick_tile_n(n):
    """Largest column-tile width in {512,256,128} dividing n whose double-
    buffered f32 output slab stays <= 16 MiB (safe on v5e/v6e/v7x VMEM)."""
    candidates = [tn for tn in (512, 256, 128) if n % tn == 0]
    for tn in candidates:
        if 2 * n * tn * 4 <= 16 * 1024 * 1024:
            return tn
    if candidates:
        return candidates[-1]
    return n  # fall back to an untiled column axis


def decoder_layer(z, gamma, beta, seed, dropout_p):
    """z: (N, D) f32; gamma/beta: (1, N) f32; seed: (1,) int32."""
    n, d = z.shape
    tn = _pick_tile_n(n)
    grid = (n // tn,)

    kernel = functools.partial(
        _decoder_kernel,
        dropout_p=float(dropout_p),
        n_rows=n,
        n_cols_total=n,
        tile_n=tn,
    )

    # VMEM budget: double-buffered output slab + resident z + RHS block +
    # gamma/beta tiles, plus headroom for in-kernel f32/bf16 temporaries.
    vmem_need = (2 * n * tn * 4        # output tile, 2 buffers
                 + 2 * n * d * 4       # z (LHS)
                 + 2 * tn * d * 4      # z row block (RHS)
                 + 4 * 2 * tn * 4      # gamma / beta tiles
                 + 4 * n * tn * 4)     # temporaries headroom
    vmem_limit = int(min(max(vmem_need, 16 * 1024 * 1024), 100 * 1024 * 1024))

    grid_spec = pltpu.PrefetchScalarGridSpec(
        num_scalar_prefetch=1,                               # seed -> SMEM
        grid=grid,
        in_specs=[
            pl.BlockSpec((n, d), lambda j, seed_ref: (0, 0)),    # z as LHS (resident)
            pl.BlockSpec((tn, d), lambda j, seed_ref: (j, 0)),   # z row-block as RHS
            pl.BlockSpec((1, tn), lambda j, seed_ref: (0, j)),   # gamma column tile
            pl.BlockSpec((1, tn), lambda j, seed_ref: (0, j)),   # beta column tile
        ],
        out_specs=pl.BlockSpec((n, tn), lambda j, seed_ref: (0, j)),
    )

    return pl.pallas_call(
        kernel,
        out_shape=jax.ShapeDtypeStruct((n, n), jnp.float32),
        grid_spec=grid_spec,
        compiler_params=pltpu.CompilerParams(
            dimension_semantics=("parallel",),
            vmem_limit_bytes=vmem_limit,
        ),
    )(seed, z, z, gamma, beta)


def decoder_layer_ref(z, gamma, beta):
    """Pure-JAX reference (dropout disabled). Mirrors the kernel's bf16 MXU
    inputs so the comparison isolates kernel correctness, not cast error."""
    zb = z.astype(jnp.bfloat16)
    h = lax.dot_general(zb, zb,
                        dimension_numbers=(((1,), (1,)), ((), ())),
                        preferred_element_type=jnp.float32)
    h = jnp.maximum(h, 0.0)
    mean = jnp.mean(h, axis=0, keepdims=True)
    var = jnp.mean((h - mean) ** 2, axis=0, keepdims=True)   # biased
    h = (h - mean) / jnp.sqrt(var + BN_EPS)
    return h * gamma + beta


if __name__ == "__main__":
    # Small shapes consistent with the module: N nodes, D latent features.
    # BatchNorm1d(num_features) requires num_features == N since h is (N, N).
    N, D = 128, 32
    DROPOUT_P = 0.1

    key = jax.random.PRNGKey(0)
    kz, kg, kb = jax.random.split(key, 3)
    z = jax.random.normal(kz, (N, D), dtype=jnp.float32)
    # PyTorch init is gamma=1, beta=0; perturb slightly to exercise the affine path.
    gamma = jnp.ones((1, N), jnp.float32) + 0.01 * jax.random.normal(kg, (1, N), dtype=jnp.float32)
    beta = 0.01 * jax.random.normal(kb, (1, N), dtype=jnp.float32)
    seed = jnp.array([1234], dtype=jnp.int32)

    # Correctness check with dropout disabled (dropout mask is kernel-internal).
    out_nodrop = decoder_layer(z, gamma, beta, seed, dropout_p=0.0)
    ref = decoder_layer_ref(z, gamma, beta)
    jax.block_until_ready(out_nodrop)
    assert jnp.allclose(out_nodrop, ref, atol=2e-2, rtol=2e-2), "mismatch vs reference"

    # Full training-mode forward: batch-stat BN + inverted dropout.
    out = decoder_layer(z, gamma, beta, seed, dropout_p=DROPOUT_P)
    jax.block_until_ready(out)
    assert out.shape == (N, N)
    assert bool(jnp.isfinite(out).all())
    print("KERNEL_OK")
</pallas_src>

<mosaic_0001>
module attributes {stable_mosaic.version = 11 : i64} {
  func.func @_decoder_kernel(%arg0: i32, %arg1: memref<1xi32, #tpu.memory_space<smem>>, %arg2: memref<128x32xf32, #tpu.memory_space<vmem>>, %arg3: memref<128x32xf32, #tpu.memory_space<vmem>>, %arg4: memref<1x128xf32, #tpu.memory_space<vmem>>, %arg5: memref<1x128xf32, #tpu.memory_space<vmem>>, %arg6: memref<128x128xf32, #tpu.memory_space<vmem>>) attributes {dimension_semantics = [#tpu.dimension_semantics<parallel>], iteration_bounds = array<i64: 1>, scalar_prefetch = 1 : i64, scratch_operands = 0 : i64, tpu.core_type = #tpu.core_type<tc>, window_params = [{pipeline_mode = #tpu.pipeline_mode<synchronous>, transform_indices = @transform_0, window_bounds = array<i64: 128, 32>}, {transform_indices = @transform_1, window_bounds = array<i64: 128, 32>}, {transform_indices = @transform_2, window_bounds = array<i64: 1, 128>}, {transform_indices = @transform_3, window_bounds = array<i64: 1, 128>}, {transform_indices = @transform_4, window_bounds = array<i64: 128, 128>}]} {
    %c0 = arith.constant 0 : index
    %c0_0 = arith.constant 0 : index
    %0 = vector.load %arg2[%c0, %c0_0] : memref<128x32xf32, #tpu.memory_space<vmem>>, vector<128x32xf32>
    %1 = arith.truncf %0 : vector<128x32xf32> to vector<128x32xbf16>
    %c0_1 = arith.constant 0 : index
    %c0_2 = arith.constant 0 : index
    %2 = vector.load %arg3[%c0_1, %c0_2] : memref<128x32xf32, #tpu.memory_space<vmem>>, vector<128x32xf32>
    %3 = arith.truncf %2 : vector<128x32xf32> to vector<128x32xbf16>
    %cst = arith.constant dense<0.000000e+00> : vector<128x128xf32>
    %4 = tpu.matmul %1, %3, %cst {dimension_numbers = #tpu.dot_dimension_numbers<[1], [1], [0], [0], [0, 0, 1, 0], [], []>} : vector<128x32xbf16>, vector<128x32xbf16>, vector<128x128xf32> -> vector<128x128xf32>
    %cst_3 = arith.constant 0.000000e+00 : f32
    %5 = vector.broadcast %cst_3 : f32 to vector<128x128xf32>
    %6 = arith.maximumf %4, %5 : vector<128x128xf32>
    %cst_4 = arith.constant dense<0.000000e+00> : vector<128xf32>
    %7 = vector.multi_reduction <add>, %6, %cst_4 [0] : vector<128x128xf32> to vector<128xf32>
    %8 = vector.shape_cast %7 : vector<128xf32> to vector<1x128xf32>
    %9 = arith.mulf %6, %6 : vector<128x128xf32>
    %cst_5 = arith.constant dense<0.000000e+00> : vector<128xf32>
    %10 = vector.multi_reduction <add>, %9, %cst_5 [0] : vector<128x128xf32> to vector<128xf32>
    %11 = vector.shape_cast %10 : vector<128xf32> to vector<1x128xf32>
    %cst_6 = arith.constant 7.812500e-03 : f32
    %12 = vector.broadcast %cst_6 : f32 to vector<1x128xf32>
    %13 = arith.mulf %8, %12 : vector<1x128xf32>
    %cst_7 = arith.constant 7.812500e-03 : f32
    %14 = vector.broadcast %cst_7 : f32 to vector<1x128xf32>
    %15 = arith.mulf %11, %14 : vector<1x128xf32>
    %16 = arith.mulf %13, %13 : vector<1x128xf32>
    %17 = arith.subf %15, %16 : vector<1x128xf32>
    %cst_8 = arith.constant 0.000000e+00 : f32
    %18 = vector.broadcast %cst_8 : f32 to vector<1x128xf32>
    %19 = arith.maximumf %17, %18 : vector<1x128xf32>
    %cst_9 = arith.constant 9.99999974E-6 : f32
    %20 = vector.broadcast %cst_9 : f32 to vector<1x128xf32>
    %21 = arith.addf %19, %20 : vector<1x128xf32>
    %22 = math.rsqrt %21 : vector<1x128xf32>
    %c0_10 = arith.constant 0 : index
    %c0_11 = arith.constant 0 : index
    %23 = vector.load %arg4[%c0_10, %c0_11] : memref<1x128xf32, #tpu.memory_space<vmem>>, vector<1x128xf32>
    %24 = arith.mulf %23, %22 : vector<1x128xf32>
    %cst_12 = arith.constant 1.000000e+00 : f32
    %25 = vector.broadcast %cst_12 : f32 to vector<1x128xf32>
    %26 = arith.mulf %24, %25 : vector<1x128xf32>
    %c0_13 = arith.constant 0 : index
    %c0_14 = arith.constant 0 : index
    %27 = vector.load %arg5[%c0_13, %c0_14] : memref<1x128xf32, #tpu.memory_space<vmem>>, vector<1x128xf32>
    %28 = arith.mulf %13, %24 : vector<1x128xf32>
    %29 = arith.subf %27, %28 : vector<1x128xf32>
    %cst_15 = arith.constant 1.000000e+00 : f32
    %30 = vector.broadcast %cst_15 : f32 to vector<1x128xf32>
    %31 = arith.mulf %29, %30 : vector<1x128xf32>
    %32 = vector.broadcast %26 : vector<1x128xf32> to vector<128x128xf32>
    %33 = arith.mulf %6, %32 : vector<128x128xf32>
    %34 = vector.broadcast %31 : vector<1x128xf32> to vector<128x128xf32>
    %35 = arith.addf %33, %34 : vector<128x128xf32>
    %c0_16 = arith.constant 0 : index
    %c0_17 = arith.constant 0 : index
    %36 = vector.load %arg6[%c0_16, %c0_17] : memref<128x128xf32, #tpu.memory_space<vmem>>, vector<128x128xf32>
    tpu.vector_store %arg6[%c0_16, %c0_17], %35 {strides = array<i32>} : memref<128x128xf32, #tpu.memory_space<vmem>>, vector<128x128xf32>,
    return
  }
  func.func @transform_0(%arg0: i32, %arg1: memref<1xi32, #tpu.memory_space<smem>>) -> (i32, i32) {
    %c0_i32 = arith.constant 0 : i32
    %c0_i32_0 = arith.constant 0 : i32
    %c0_i32_1 = arith.constant 0 : i32
    return %c0_i32, %c0_i32_0 : i32, i32
  }
  func.func @transform_1(%arg0: i32, %arg1: memref<1xi32, #tpu.memory_space<smem>>) -> (i32, i32) {
    %c0_i32 = arith.constant 0 : i32
    %c0_i32_0 = arith.constant 0 : i32
    return %arg0, %c0_i32 : i32, i32
  }
  func.func @transform_2(%arg0: i32, %arg1: memref<1xi32, #tpu.memory_space<smem>>) -> (i32, i32) {
    %c0_i32 = arith.constant 0 : i32
    %c0_i32_0 = arith.constant 0 : i32
    return %c0_i32, %arg0 : i32, i32
  }
  func.func @transform_3(%arg0: i32, %arg1: memref<1xi32, #tpu.memory_space<smem>>) -> (i32, i32) {
    %c0_i32 = arith.constant 0 : i32
    %c0_i32_0 = arith.constant 0 : i32
    return %c0_i32, %arg0 : i32, i32
  }
  func.func @transform_4(%arg0: i32, %arg1: memref<1xi32, #tpu.memory_space<smem>>) -> (i32, i32) {
    %c0_i32 = arith.constant 0 : i32
    %c0_i32_0 = arith.constant 0 : i32
    return %c0_i32, %arg0 : i32, i32
  }
}

</mosaic_0001>

<llo_original>
// kernel: tpu_custom_call.1
$region0: #{tpu_custom_call.1}
  #allocation0 [shape = 'u32[]', space=smem, size = 0x4, offset = 0x4, fixed_abs, tag = 'smem constant byte address 0x4 - core index']
  #allocation1 [shape = 'u32[144,128]{1,0:T(1,128)}', space=vmem, size = 0x12000, scoped, tag = 'internal scratch']
  #allocation2 [shape = 's32[1]{0}', space=sflag, size = 0x4, scoped, tag = 'scoped memory for tpu_custom_call.1']
  #allocation3 [shape = 's32[1]{0:T(128)S(6)}', space=smem, size = 0x200, scoped, tag = 'prefetched SMEM operand 0']
  %s0 = inlined_call_operand.<no memory space> [shape: s32[1], index: 0, kind: input, shape index: {}]
  %s1 = inlined_call_operand.vmem [shape: f32[128,32], index: 1, kind: input, shape index: {}]
  %s2 = inlined_call_operand.vmem [shape: f32[128,32], index: 2, kind: input, shape index: {}]
  %s3 = inlined_call_operand.vmem [shape: f32[1,128], index: 3, kind: input, shape index: {}]
  %s4 = inlined_call_operand.vmem [shape: f32[1,128], index: 4, kind: input, shape index: {}]
  %s5 = inlined_call_operand.hbm [shape: f32[128,128], index: 5, kind: output, shape index: {}]
  %s6 = sld [smem:[#allocation0]]
  $region26: #{tpu_custom_call.1} parent=0
    _
  %s8 = ssub.s32 1, %s6
  %s9 = scalar_select 0, %s8, %s6
  %10 = sst [smem:[#allocation3]] %s0
  $region1: #{tpu_custom_call.1} parent=0
    #allocation4 [shape = 'u8[65536]{0}', space=vmem, size = 0x10000, scoped, tag = 'output window, operand 0, single buffered']
    #allocation5 [shape = 's32[1]{0}', space=sflag, size = 0x4, scoped, tag = 'scoped memory for tpu_custom_call.1']
    %11 = vsyncpa [#allocation5], 0
    // Predicated region
    $region2: #{tpu_custom_call.1} parent=1 // pred_check
      _
    $region3: #{tpu_custom_call.1} parent=1 // pred_check_branch
      %13 = sbr.rel (0) target = $region5
    $region4: #{tpu_custom_call.1} parent=1 // pred_region
      _
    $region5: #{tpu_custom_call.1} parent=1 // pred_fallthru
      _
    // Predicated region
    $region6: #{tpu_custom_call.1} parent=1 // pred_check
      _
    $region7: #{tpu_custom_call.1} parent=1 // pred_check_branch
      %15 = sbr.rel (0) target = $region9
    $region8: #{tpu_custom_call.1} parent=1 // pred_region
      _
    $region9: #{tpu_custom_call.1} parent=1 // pred_fallthru
      _
    // Predicated region
    $region10: #{tpu_custom_call.1} parent=1 // pred_check
      _
    $region11: #{tpu_custom_call.1} parent=1 // pred_check_branch
      %17 = sbr.rel (0) target = $region13
    $region12: #{tpu_custom_call.1} parent=1 // pred_region
      _
    $region13: #{tpu_custom_call.1} parent=1 // pred_fallthru
      _
    // Predicated region
    $region14: #{tpu_custom_call.1} parent=1 // pred_check
      _
    $region15: #{tpu_custom_call.1} parent=1 // pred_check_branch
      %19 = sbr.rel (0) target = $region17
    $region16: #{tpu_custom_call.1} parent=1 // pred_region
      _
    $region17: #{tpu_custom_call.1} parent=1 // pred_fallthru
      _
    %v21 = vld [vmem:[%s1] sm:$0xff]
    %v22 = vld [vmem:[%s1 + $0x8] sm:$0xff]
    %v23 = vld [vmem:[%s1 + $0x10] sm:$0xff]
    %v24 = vld [vmem:[%s1 + $0x18] sm:$0xff]
    %v25 = vld [vmem:[%s1 + $0x20] sm:$0xff]
    %v26 = vld [vmem:[%s1 + $0x28] sm:$0xff]
    %v27 = vld [vmem:[%s1 + $0x30] sm:$0xff]
    %v28 = vld [vmem:[%s1 + $0x38] sm:$0xff]
    %v29 = vld [vmem:[%s1 + $0x40] sm:$0xff]
    %v30 = vld [vmem:[%s1 + $0x48] sm:$0xff]
    %v31 = vld [vmem:[%s1 + $0x50] sm:$0xff]
    %v32 = vld [vmem:[%s1 + $0x58] sm:$0xff]
    %v33 = vld [vmem:[%s1 + $0x60] sm:$0xff]
    %v34 = vld [vmem:[%s1 + $0x68] sm:$0xff]
    %v35 = vld [vmem:[%s1 + $0x70] sm:$0xff]
    %v36 = vld [vmem:[%s1 + $0x78] sm:$0xff]
    %v37 = vpack.c.bf16 %v22, %v21
    %v38 = vpack.c.bf16 %v24, %v23
    %v39 = vpack.c.bf16 %v26, %v25
    %v40 = vpack.c.bf16 %v28, %v27
    %v41 = vpack.c.bf16 %v30, %v29
    %v42 = vpack.c.bf16 %v32, %v31
    %v43 = vpack.c.bf16 %v34, %v33
    %v44 = vpack.c.bf16 %v36, %v35
    %v45 = vld [vmem:[%s2] sm:$0xff]
    %v46 = vld [vmem:[%s2 + $0x8] sm:$0xff]
    %v47 = vld [vmem:[%s2 + $0x10] sm:$0xff]
    %v48 = vld [vmem:[%s2 + $0x18] sm:$0xff]
    %v49 = vld [vmem:[%s2 + $0x20] sm:$0xff]
    %v50 = vld [vmem:[%s2 + $0x28] sm:$0xff]
    %v51 = vld [vmem:[%s2 + $0x30] sm:$0xff]
    %v52 = vld [vmem:[%s2 + $0x38] sm:$0xff]
    %v53 = vld [vmem:[%s2 + $0x40] sm:$0xff]
    %v54 = vld [vmem:[%s2 + $0x48] sm:$0xff]
    %v55 = vld [vmem:[%s2 + $0x50] sm:$0xff]
    %v56 = vld [vmem:[%s2 + $0x58] sm:$0xff]
    %v57 = vld [vmem:[%s2 + $0x60] sm:$0xff]
    %v58 = vld [vmem:[%s2 + $0x68] sm:$0xff]
    %v59 = vld [vmem:[%s2 + $0x70] sm:$0xff]
    %v60 = vld [vmem:[%s2 + $0x78] sm:$0xff]
    %v61 = vpack.c.bf16 %v46, %v45
    %v62 = vpack.c.bf16 %v48, %v47
    %v63 = vpack.c.bf16 %v50, %v49
    %v64 = vpack.c.bf16 %v52, %v51
    %v65 = vpack.c.bf16 %v54, %v53
    %v66 = vpack.c.bf16 %v56, %v55
    %v67 = vpack.c.bf16 %v58, %v57
    %v68 = vpack.c.bf16 %v60, %v59
    %vm69 = vcmask 261120
    %v71 = vsel %vm69, %v37, 0
    %v74 = vsel %vm69, %v38, 0
    %v77 = vsel %vm69, %v39, 0
    %v80 = vsel %vm69, %v40, 0
    %v83 = vsel %vm69, %v41, 0
    %v86 = vsel %vm69, %v42, 0
    %v89 = vsel %vm69, %v43, 0
    %v92 = vsel %vm69, %v44, 0
    %v95 = vsel %vm69, %v61, 0
    %v98 = vsel %vm69, %v62, 0
    %v101 = vsel %vm69, %v63, 0
    %v104 = vsel %vm69, %v64, 0
    %v107 = vsel %vm69, %v65, 0
    %v110 = vsel %vm69, %v66, 0
    %v113 = vsel %vm69, %v67, 0
    %v116 = vsel %vm69, %v68, 0
    %118 = vmatprep.subr.bf16.mxu0 0
    %119 = vmatpush1.bf16.xpose.msra.mxu0 %v95
    %120 = vmatprep.subr.bf16.mxu0 0
    %121 = vmatpush1.bf16.xpose.msra.mxu0 %v98
    %122 = vmatprep.subr.bf16.mxu0 0
    %123 = vmatpush1.bf16.xpose.msra.mxu0 %v101
    %124 = vmatprep.subr.bf16.mxu0 0
    %125 = vmatpush1.bf16.xpose.msra.mxu0 %v104
    %126 = vmatprep.subr.bf16.mxu0 0
    %127 = vmatpush1.bf16.xpose.msra.mxu0 %v107
    %128 = vmatprep.subr.bf16.mxu0 0
    %129 = vmatpush1.bf16.xpose.msra.mxu0 %v110
    %130 = vmatprep.subr.bf16.mxu0 0
    %131 = vmatpush1.bf16.xpose.msra.mxu0 %v113
    %132 = vmatprep.subr.bf16.mxu0 0
    %133 = vmatpush1.bf16.xpose.msra.mxu0 %v116
    %134 = vmatprep.subr.bf16.mxu0 0
    %135 = vmatpush1.bf16.xpose.msra.mxu0 0
    %136 = vmatprep.subr.bf16.mxu0 0
    %137 = vmatpush1.bf16.xpose.msra.mxu0 0
    %138 = vmatprep.subr.bf16.mxu0 0
    %139 = vmatpush1.bf16.xpose.msra.mxu0 0
    %140 = vmatprep.subr.bf16.mxu0 0
    %141 = vmatpush1.bf16.xpose.msra.mxu0 0
    %142 = vmatprep.subr.bf16.mxu0 0
    %143 = vmatpush1.bf16.xpose.msra.mxu0 0
    %144 = vmatprep.subr.bf16.mxu0 0
    %145 = vmatpush1.bf16.xpose.msra.mxu0 0
    %146 = vmatprep.subr.bf16.mxu0 0
    %147 = vmatpush1.bf16.xpose.msra.mxu0 0
    %148 = vmatprep.subr.bf16.mxu0 0
    %149 = vmatpush1.bf16.xpose.msra.mxu0 0
    %150 = vmatprep.mubr.bf16.mxu0 0
    %151 = vmatmul.mubr.bf16.gmra.mrb[0].mxu0 %v71
    %v152 = vpop.f32.mrb[0].mxu0
    %v153 = vadd.f32 0.0, %v152
    %v154 = vpop.f32.mrb[0].mxu0
    %v155 = vpop.f32.mrb[0].mxu0
    %v156 = vadd.f32 0.0, %v155
    %v157 = vpop.f32.mrb[0].mxu0
    %158 = vmatprep.mubr.bf16.mxu0 0
    %159 = vmatmul.mubr.bf16.gmra.mrb[0].mxu0 %v74
    %v160 = vpop.f32.mrb[0].mxu0
    %v161 = vadd.f32 0.0, %v160
    %v162 = vpop.f32.mrb[0].mxu0
    %v163 = vpop.f32.mrb[0].mxu0
    %v164 = vadd.f32 0.0, %v163
    %v165 = vpop.f32.mrb[0].mxu0
    %166 = vmatprep.mubr.bf16.mxu0 0
    %167 = vmatmul.mubr.bf16.gmra.mrb[0].mxu0 %v77
    %v168 = vpop.f32.mrb[0].mxu0
    %v169 = vadd.f32 0.0, %v168
    %v170 = vpop.f32.mrb[0].mxu0
    %v171 = vpop.f32.mrb[0].mxu0
    %v172 = vadd.f32 0.0, %v171
    %v173 = vpop.f32.mrb[0].mxu0
    %174 = vmatprep.mubr.bf16.mxu0 0
    %175 = vmatmul.mubr.bf16.gmra.mrb[0].mxu0 %v80
    %v176 = vpop.f32.mrb[0].mxu0
    %v177 = vadd.f32 0.0, %v176
    %v178 = vpop.f32.mrb[0].mxu0
    %v179 = vpop.f32.mrb[0].mxu0
    %v180 = vadd.f32 0.0, %v179
    %v181 = vpop.f32.mrb[0].mxu0
    %182 = vmatprep.mubr.bf16.mxu0 0
    %183 = vmatmul.mubr.bf16.gmra.mrb[0].mxu0 %v83
    %v184 = vpop.f32.mrb[0].mxu0
    %v185 = vadd.f32 0.0, %v184
    %v186 = vpop.f32.mrb[0].mxu0
    %v187 = vpop.f32.mrb[0].mxu0
    %v188 = vadd.f32 0.0, %v187
    %v189 = vpop.f32.mrb[0].mxu0
    %190 = vmatprep.mubr.bf16.mxu0 0
    %191 = vmatmul.mubr.bf16.gmra.mrb[0].mxu0 %v86
    %v192 = vpop.f32.mrb[0].mxu0
    %v193 = vadd.f32 0.0, %v192
    %v194 = vpop.f32.mrb[0].mxu0
    %v195 = vpop.f32.mrb[0].mxu0
    %v196 = vadd.f32 0.0, %v195
    %v197 = vpop.f32.mrb[0].mxu0
    %198 = vmatprep.mubr.bf16.mxu0 0
    %199 = vmatmul.mubr.bf16.gmra.mrb[0].mxu0 %v89
    %v200 = vpop.f32.mrb[0].mxu0
    %v201 = vadd.f32 0.0, %v200
    %v202 = vpop.f32.mrb[0].mxu0
    %v203 = vpop.f32.mrb[0].mxu0
    %v204 = vadd.f32 0.0, %v203
    %v205 = vpop.f32.mrb[0].mxu0
    %206 = vmatprep.mubr.bf16.mxu0 0
    %207 = vmatmul.mubr.bf16.gmra.mrb[0].mxu0 %v92
    %v208 = vpop.f32.mrb[0].mxu0
    %v209 = vadd.f32 0.0, %v208
    %v210 = vpop.f32.mrb[0].mxu0
    %v211 = vpop.f32.mrb[0].mxu0
    %v212 = vadd.f32 0.0, %v211
    %v213 = vpop.f32.mrb[0].mxu0
    %214 = vdwg.mxu0
    %v215 = vmax.f32 %v153, 0.0
    %v216 = vmax.f32 %v156, 0.0
    %v217 = vmax.f32 %v161, 0.0
    %v218 = vmax.f32 %v164, 0.0
    %v219 = vmax.f32 %v169, 0.0
    %v220 = vmax.f32 %v172, 0.0
    %v221 = vmax.f32 %v177, 0.0
    %v222 = vmax.f32 %v180, 0.0
    %v223 = vmax.f32 %v185, 0.0
    %v224 = vmax.f32 %v188, 0.0
    %v225 = vmax.f32 %v193, 0.0
    %v226 = vmax.f32 %v196, 0.0
    %v227 = vmax.f32 %v201, 0.0
    %v228 = vmax.f32 %v204, 0.0
    %v229 = vmax.f32 %v209, 0.0
    %v230 = vmax.f32 %v212, 0.0
    %v231 = vadd.f32 %v215, %v216
    %v232 = vadd.f32 %v231, %v217
    %v233 = vadd.f32 %v232, %v218
    %v234 = vadd.f32 %v233, %v219
    %v235 = vadd.f32 %v234, %v220
    %v236 = vadd.f32 %v235, %v221
    %v237 = vadd.f32 %v236, %v222
    %v238 = vadd.f32 %v237, %v223
    %v239 = vadd.f32 %v238, %v224
    %v240 = vadd.f32 %v239, %v225
    %v241 = vadd.f32 %v240, %v226
    %v242 = vadd.f32 %v241, %v227
    %v243 = vadd.f32 %v242, %v228
    %v244 = vadd.f32 %v243, %v229
    %v245 = vadd.f32 %v244, %v230
    %v246 = vrot.slane %v245, 4
    %v247 = vadd.f32 %v245, %v246
    %v248 = vrot.slane %v247, 2
    %v249 = vadd.f32 %v247, %v248
    %v250 = vrot.slane %v249, 1
    %v251 = vadd.f32 %v249, %v250
    %v252 = vmul.f32 %v215, %v215
    %v253 = vmul.f32 %v216, %v216
    %v254 = vmul.f32 %v217, %v217
    %v255 = vmul.f32 %v218, %v218
    %v256 = vmul.f32 %v219, %v219
    %v257 = vmul.f32 %v220, %v220
    %v258 = vmul.f32 %v221, %v221
    %v259 = vmul.f32 %v222, %v222
    %v260 = vmul.f32 %v223, %v223
    %v261 = vmul.f32 %v224, %v224
    %v262 = vmul.f32 %v225, %v225
    %v263 = vmul.f32 %v226, %v226
    %v264 = vmul.f32 %v227, %v227
    %v265 = vmul.f32 %v228, %v228
    %v266 = vmul.f32 %v229, %v229
    %v267 = vmul.f32 %v230, %v230
    %v268 = vadd.f32 %v252, %v253
    %v269 = vadd.f32 %v268, %v254
    %v270 = vadd.f32 %v269, %v255
    %v271 = vadd.f32 %v270, %v256
    %v272 = vadd.f32 %v271, %v257
    %v273 = vadd.f32 %v272, %v258
    %v274 = vadd.f32 %v273, %v259
    %v275 = vadd.f32 %v274, %v260
    %v276 = vadd.f32 %v275, %v261
    %v277 = vadd.f32 %v276, %v262
    %v278 = vadd.f32 %v277, %v263
    %v279 = vadd.f32 %v278, %v264
    %v280 = vadd.f32 %v279, %v265
    %v281 = vadd.f32 %v280, %v266
    %v282 = vadd.f32 %v281, %v267
    %v283 = vrot.slane %v282, 4
    %v284 = vadd.f32 %v282, %v283
    %v285 = vrot.slane %v284, 2
    %v286 = vadd.f32 %v284, %v285
    %v287 = vrot.slane %v286, 1
    %v288 = vadd.f32 %v286, %v287
    %v289 = vmul.f32 %v251, 0.0078125
    %v290 = vmul.f32 %v288, 0.0078125
    %v291 = vmul.f32 %v289, %v289
    %v292 = vsub.f32 %v290, %v291
    %v293 = vmax.f32 %v292, 0.0
    %v294 = vadd.f32 %v293, 1e-05
    %v295 = vrsqrt.pop %v294
    %v296 = vld [vmem:[%s3] sm:$0x1]
    %v297 = vmul.f32 %v296, %v295
    %v298 = vld [vmem:[%s4] sm:$0x1]
    %v299 = vmul.f32 %v289, %v297
    %v300 = vsub.f32 %v298, %v299
    %v302 = vlaneseq
    %v303 = vshrl.u32 %v302, 7
    %v304 = vsub.s32 0, %v303
    %v305 = vrot.slane %v297, %v304
    %v307 = vmul.f32 %v215, %v305
    %v308 = vmul.f32 %v216, %v305
    %v309 = vmul.f32 %v217, %v305
    %v310 = vmul.f32 %v218, %v305
    %v311 = vmul.f32 %v219, %v305
    %v312 = vmul.f32 %v220, %v305
    %v313 = vmul.f32 %v221, %v305
    %v314 = vmul.f32 %v222, %v305
    %v315 = vmul.f32 %v223, %v305
    %v316 = vmul.f32 %v224, %v305
    %v317 = vmul.f32 %v225, %v305
    %v318 = vmul.f32 %v226, %v305
    %v319 = vmul.f32 %v227, %v305
    %v320 = vmul.f32 %v228, %v305
    %v321 = vmul.f32 %v229, %v305
    %v322 = vmul.f32 %v230, %v305
    %v324 = vlaneseq
    %v325 = vshrl.u32 %v324, 7
    %v326 = vsub.s32 0, %v325
    %v327 = vrot.slane %v300, %v326
    %v329 = vadd.f32 %v307, %v327
    %v330 = vadd.f32 %v308, %v327
    %v331 = vadd.f32 %v309, %v327
    %v332 = vadd.f32 %v310, %v327
    %v333 = vadd.f32 %v311, %v327
    %v334 = vadd.f32 %v312, %v327
    %v335 = vadd.f32 %v313, %v327
    %v336 = vadd.f32 %v314, %v327
    %v337 = vadd.f32 %v315, %v327
    %v338 = vadd.f32 %v316, %v327
    %v339 = vadd.f32 %v317, %v327
    %v340 = vadd.f32 %v318, %v327
    %v341 = vadd.f32 %v319, %v327
    %v342 = vadd.f32 %v320, %v327
    %v343 = vadd.f32 %v321, %v327
    %v344 = vadd.f32 %v322, %v327
    %345 = vst [vmem:[#allocation4] sm:$0xff] %v329
    %346 = vst [vmem:[#allocation4 + $0x8] sm:$0xff] %v330
    %347 = vst [vmem:[#allocation4 + $0x10] sm:$0xff] %v331
    %348 = vst [vmem:[#allocation4 + $0x18] sm:$0xff] %v332
    %349 = vst [vmem:[#allocation4 + $0x20] sm:$0xff] %v333
    %350 = vst [vmem:[#allocation4 + $0x28] sm:$0xff] %v334
    %351 = vst [vmem:[#allocation4 + $0x30] sm:$0xff] %v335
    %352 = vst [vmem:[#allocation4 + $0x38] sm:$0xff] %v336
    %353 = vst [vmem:[#allocation4 + $0x40] sm:$0xff] %v337
    %354 = vst [vmem:[#allocation4 + $0x48] sm:$0xff] %v338
    %355 = vst [vmem:[#allocation4 + $0x50] sm:$0xff] %v339
    %356 = vst [vmem:[#allocation4 + $0x58] sm:$0xff] %v340
    %357 = vst [vmem:[#allocation4 + $0x60] sm:$0xff] %v341
    %358 = vst [vmem:[#allocation4 + $0x68] sm:$0xff] %v342
    %359 = vst [vmem:[#allocation4 + $0x70] sm:$0xff] %v343
    %360 = vst [vmem:[#allocation4 + $0x78] sm:$0xff] %v344
    // Predicated region
    $region18: #{tpu_custom_call.1} parent=1 // pred_check
      _
    $region19: #{tpu_custom_call.1} parent=1 // pred_check_branch
      %362 = sbr.rel (0) target = $region21
    $region20: #{tpu_custom_call.1} parent=1 // pred_region
      %s364 = ssub.s32 2048, 2048
      %365 = vsyncadd [#allocation5], %s364
      %s366 = sshll.u32 [#allocation4], 4
      %s367 = int_to_ptr.vmem [resolvable:$true] %s366
      %372 = dma.vmem_to_hbm [thread:$0]  %s367, 2048, %s5, [#allocation5], 128, 128, 8
    $region21: #{tpu_custom_call.1} parent=1 // pred_fallthru
      _
    // Predicated region
    $region22: #{tpu_custom_call.1} parent=1 // pred_check
      _
    $region23: #{tpu_custom_call.1} parent=1 // pred_check_branch
      %374 = sbr.rel (0) target = $region25
    $region24: #{tpu_custom_call.1} parent=1 // pred_region
      %375 = dma.done [#allocation5], 2048
    $region25: #{tpu_custom_call.1} parent=1 // pred_fallthru
      _
    %376 = vsyncpa [#allocation5], 1

</llo_original>
